<compile_context>
chip_gen: v6e
topology: v6e:2x2x1
jax: 0.10.0
libtpu: 0.0.40
codegen_flags: <defaults>
</compile_context>

<pallas_src>
import functools

import jax
import jax.numpy as jnp
from jax import lax
from jax.experimental import pallas as pl
from jax.experimental.pallas import tpu as pltpu


# ----------------------------- configuration -------------------------------
N_AGENTS = 8          # B (batch == n_agents in the 2-D branch)
INPUT_DIM = 32        # per-agent observation size
HIDDEN = 64           # args.rnn_hidden_dim
N_ACTIONS = 16        # args.n_actions
PREDICT_DIM = 64      # args.predict_net_dim
LATENT = 64           # Encoder output dim (fixed to 64 in the module)


# ------------------------------- kernel ------------------------------------
def rnn_agent_kernel(
    # inputs / state
    inputs_ref, h0_ref,
    # fc1
    fc1_w_ref, fc1_b_ref,
    # fused GRU (2H, 4H) / (1, 4H): columns = [r_pre | z_pre | i_n | h_n]
    gru_w_ref, gru_b_ref,
    # fused h_new consumers (H, 8A + P + A): [per-agent mlps | enc_w1 | fc2]
    post_w_ref, post_b_ref,
    # fused encoder-mu + fc3
    enc2_w_ref, enc2_b_ref,
    # block-diagonal extraction helpers
    mask_ref, sel_ref,
    # outputs
    q_ref, gru_out_ref, local_q_ref, qf_ref,
    *, hidden, predict_dim, n_agents, n_actions,
):
    f32 = jnp.float32
    H = hidden
    A = n_actions
    LQ = n_agents * A                       # 128

    x = inputs_ref[...]
    h0 = h0_ref[...]

    # ---- fc1 + relu --------------------------------------------------------
    x1 = jnp.dot(x, fc1_w_ref[...], preferred_element_type=f32) + fc1_b_ref[...]
    x1 = jnp.maximum(x1, 0.0)

    # ---- single GRU step, fused ih+hh matmul (PyTorch gate order r, z, n) ---
    xh = jnp.concatenate([x1, h0], axis=1)                       # (B, 2H) = (8, 128)
    g = jnp.dot(xh, gru_w_ref[...], preferred_element_type=f32) + gru_b_ref[...]
    r = jax.nn.sigmoid(g[:, 0:H])
    zg = jax.nn.sigmoid(g[:, H:2 * H])
    n = jnp.tanh(g[:, 2 * H:3 * H] + r * g[:, 3 * H:4 * H])
    h_new = (1.0 - zg) * n + zg * h0                             # (B, H)
    gru_out_ref[...] = h_new

    # ---- one lane-dense matmul for every consumer of h_new ------------------
    post = jnp.dot(h_new, post_w_ref[...], preferred_element_type=f32) + post_b_ref[...]
    local_full = post[:, 0:LQ]                                   # (B, 8A) = (8, 128)
    eh = jnp.maximum(post[:, LQ:LQ + predict_dim], 0.0)          # encoder hidden
    q_lin = post[:, LQ + predict_dim:LQ + predict_dim + A]       # fc2(h_new)

    # ---- per-agent local_q: block-diag via mask + one-hot selector matmul ----
    local_q = jnp.dot(local_full * mask_ref[...], sel_ref[...],
                      preferred_element_type=f32)                # (B, A)

    # ---- q_f = fc3(encoder_mu(relu(eh)))  (mu/fc3 weights pre-fused) ---------
    q_f = jnp.dot(eh, enc2_w_ref[...], preferred_element_type=f32) + enc2_b_ref[...]

    local_q_ref[...] = local_q
    qf_ref[...] = q_f
    q_ref[...] = q_lin + local_q + q_f


# --------------------------- parameter fusion --------------------------------
def fuse_params(p):
    """Pack raw (pre-transposed) weights into the fused kernel layout."""
    f32 = jnp.float32
    H, A, P = HIDDEN, N_ACTIONS, PREDICT_DIM
    zH = jnp.zeros((H, H), f32)

    # GRU: rows 0:H multiply x1, rows H:2H multiply h0.
    wih, whh = p["gru_wih"], p["gru_whh"]          # (H, 3H), gate order r|z|n
    gru_w = jnp.concatenate(
        [jnp.concatenate([wih[:, 0:H], wih[:, H:2 * H], wih[:, 2 * H:3 * H], zH], axis=1),
         jnp.concatenate([whh[:, 0:H], whh[:, H:2 * H], zH, whh[:, 2 * H:3 * H]], axis=1)],
        axis=0)                                                     # (2H, 4H)
    gru_b = jnp.concatenate(
        [p["gru_bih"][:, 0:2 * H] + p["gru_bhh"][:, 0:2 * H],       # r_pre, z_pre biases
         p["gru_bih"][:, 2 * H:3 * H],                              # i_n bias
         p["gru_bhh"][:, 2 * H:3 * H]], axis=1)                     # h_n bias

    # All consumers of h_new: [per-agent mlps | encoder fc1 | fc2]
    mlp_w_all = jnp.transpose(p["mlp_w"], (1, 0, 2)).reshape(H, N_AGENTS * A)   # (H, 8A)
    post_w = jnp.concatenate([mlp_w_all, p["enc_w1"], p["fc2_w"]], axis=1)      # (H, 8A+P+A)
    post_b = jnp.concatenate([p["mlp_b"].reshape(1, N_AGENTS * A),
                              p["enc_b1"], p["fc2_b"]], axis=1)

    # Fold encoder mu-head into fc3 (pure reassociation, f32-negligible error).
    enc2_w = p["enc_wmu"] @ p["fc3_w"]                              # (P, A)
    enc2_b = p["enc_bmu"] @ p["fc3_w"] + p["fc3_b"]                 # (1, A)

    # Block-diagonal extraction helpers.
    col = jnp.arange(N_AGENTS * A)
    mask = (col[None, :] // A == jnp.arange(N_AGENTS)[:, None]).astype(f32)     # (B, 8A)
    sel = (col[:, None] % A == jnp.arange(A)[None, :]).astype(f32)              # (8A, A)

    return dict(fc1_w=p["fc1_w"], fc1_b=p["fc1_b"],
                gru_w=gru_w, gru_b=gru_b,
                post_w=post_w, post_b=post_b,
                enc2_w=enc2_w, enc2_b=enc2_b,
                mask=mask, sel=sel)


# ------------------------------- wrapper ------------------------------------
def rnn_agent_forward(inputs, h0, params):
    B, _ = inputs.shape
    assert B == N_AGENTS, (
        f"2-D branch assumes batch == n_agents ({N_AGENTS}); got batch={B}")
    A, H = N_ACTIONS, HIDDEN
    f32 = jnp.float32
    vmem = pl.BlockSpec(memory_space=pltpu.MemorySpace.VMEM)

    fp = fuse_params(params)
    args = (
        inputs, h0,
        fp["fc1_w"], fp["fc1_b"],
        fp["gru_w"], fp["gru_b"],
        fp["post_w"], fp["post_b"],
        fp["enc2_w"], fp["enc2_b"],
        fp["mask"], fp["sel"],
    )

    kernel = functools.partial(
        rnn_agent_kernel,
        hidden=H, predict_dim=PREDICT_DIM, n_agents=N_AGENTS, n_actions=A)

    return pl.pallas_call(
        kernel,
        out_shape=(
            jax.ShapeDtypeStruct((B, A), f32),   # q
            jax.ShapeDtypeStruct((B, H), f32),   # gru_out
            jax.ShapeDtypeStruct((B, A), f32),   # local_q
            jax.ShapeDtypeStruct((B, A), f32),   # q_f
        ),
        in_specs=[vmem] * len(args),
        out_specs=(vmem, vmem, vmem, vmem),
    )(*args)


# ------------------------- deterministic parameters --------------------------
def make_params(key):
    f32 = jnp.float32

    def lin(k, fan_in, fan_out):
        kw, kb = jax.random.split(k)
        bound = 1.0 / jnp.sqrt(fan_in)
        w = jax.random.uniform(kw, (fan_in, fan_out), f32, -bound, bound)   # pre-transposed
        b = jax.random.uniform(kb, (1, fan_out), f32, -bound, bound)
        return w, b

    keys = jax.random.split(key, 12)
    p = {}
    p["fc1_w"], p["fc1_b"] = lin(keys[0], INPUT_DIM, HIDDEN)
    # GRU: weight_ih (3H, H) -> pass (H, 3H); weight_hh (3H, H) -> (H, 3H)
    p["gru_wih"], p["gru_bih"] = lin(keys[1], HIDDEN, 3 * HIDDEN)
    p["gru_whh"], p["gru_bhh"] = lin(keys[2], HIDDEN, 3 * HIDDEN)
    p["fc2_w"], p["fc2_b"] = lin(keys[3], HIDDEN, N_ACTIONS)
    p["fc3_w"], p["fc3_b"] = lin(keys[4], LATENT, N_ACTIONS)
    # per-agent mlps stacked
    mlp_ws, mlp_bs = [], []
    mkeys = jax.random.split(keys[5], N_AGENTS)
    for i in range(N_AGENTS):
        w, b = lin(mkeys[i], HIDDEN, N_ACTIONS)
        mlp_ws.append(w)
        mlp_bs.append(b[0])
    p["mlp_w"] = jnp.stack(mlp_ws)            # (n_agents, H, A)
    p["mlp_b"] = jnp.stack(mlp_bs)            # (n_agents, A)
    # encoder
    p["enc_w1"], p["enc_b1"] = lin(keys[6], HIDDEN, PREDICT_DIM)
    p["enc_wmu"], p["enc_bmu"] = lin(keys[7], PREDICT_DIM, LATENT)
    return p


# ------------------------------ JAX reference --------------------------------
def reference_forward(inputs, h0, p):
    x1 = jax.nn.relu(inputs @ p["fc1_w"] + p["fc1_b"])
    gi = x1 @ p["gru_wih"] + p["gru_bih"]
    gh = h0 @ p["gru_whh"] + p["gru_bhh"]
    H = HIDDEN
    r = jax.nn.sigmoid(gi[:, :H] + gh[:, :H])
    zg = jax.nn.sigmoid(gi[:, H:2 * H] + gh[:, H:2 * H])
    n = jnp.tanh(gi[:, 2 * H:] + r * gh[:, 2 * H:])
    h_new = (1 - zg) * n + zg * h0
    eh = jax.nn.relu(h_new @ p["enc_w1"] + p["enc_b1"])
    z = eh @ p["enc_wmu"] + p["enc_bmu"]
    q = h_new @ p["fc2_w"] + p["fc2_b"]
    q_f = z @ p["fc3_w"] + p["fc3_b"]
    local_q = jnp.einsum("bh,bha->ba", h_new, p["mlp_w"]) + p["mlp_b"]
    return q + local_q + q_f, h_new, local_q, q_f


# --------------------------------- main --------------------------------------
if __name__ == "__main__":
    key = jax.random.PRNGKey(0)
    k_in, k_h, k_p = jax.random.split(key, 3)
    inputs = jax.random.normal(k_in, (N_AGENTS, INPUT_DIM), jnp.float32)
    h0 = jax.random.normal(k_h, (N_AGENTS, HIDDEN), jnp.float32)
    params = make_params(k_p)

    outs = jax.block_until_ready(rnn_agent_forward(inputs, h0, params))
    refs = reference_forward(inputs, h0, params)

    for o, r in zip(outs, refs):
        assert o.shape == r.shape, (o.shape, r.shape)
        assert jnp.allclose(o, r, atol=1e-4, rtol=1e-4), float(jnp.abs(o - r).max())

    print("KERNEL_OK")
</pallas_src>

<mosaic_0001>
module attributes {stable_mosaic.version = 11 : i64} {
  func.func @rnn_agent_kernel(%arg0: memref<8x32xf32, #tpu.memory_space<vmem>>, %arg1: memref<8x64xf32, #tpu.memory_space<vmem>>, %arg2: memref<32x64xf32, #tpu.memory_space<vmem>>, %arg3: memref<1x64xf32, #tpu.memory_space<vmem>>, %arg4: memref<128x256xf32, #tpu.memory_space<vmem>>, %arg5: memref<1x256xf32, #tpu.memory_space<vmem>>, %arg6: memref<64x208xf32, #tpu.memory_space<vmem>>, %arg7: memref<1x208xf32, #tpu.memory_space<vmem>>, %arg8: memref<64x16xf32, #tpu.memory_space<vmem>>, %arg9: memref<1x16xf32, #tpu.memory_space<vmem>>, %arg10: memref<8x128xf32, #tpu.memory_space<vmem>>, %arg11: memref<128x16xf32, #tpu.memory_space<vmem>>, %arg12: memref<8x16xf32, #tpu.memory_space<vmem>>, %arg13: memref<8x64xf32, #tpu.memory_space<vmem>>, %arg14: memref<8x16xf32, #tpu.memory_space<vmem>>, %arg15: memref<8x16xf32, #tpu.memory_space<vmem>>) attributes {dimension_semantics = [], scalar_prefetch = 0 : i64, scratch_operands = 0 : i64, tpu.core_type = #tpu.core_type<tc>} {
    %c0 = arith.constant 0 : index
    %c0_0 = arith.constant 0 : index
    %0 = vector.load %arg0[%c0, %c0_0] : memref<8x32xf32, #tpu.memory_space<vmem>>, vector<8x32xf32>
    %c0_1 = arith.constant 0 : index
    %c0_2 = arith.constant 0 : index
    %1 = vector.load %arg1[%c0_1, %c0_2] : memref<8x64xf32, #tpu.memory_space<vmem>>, vector<8x64xf32>
    %c0_3 = arith.constant 0 : index
    %c0_4 = arith.constant 0 : index
    %2 = vector.load %arg2[%c0_3, %c0_4] : memref<32x64xf32, #tpu.memory_space<vmem>>, vector<32x64xf32>
    %cst = arith.constant dense<0.000000e+00> : vector<8x64xf32>
    %3 = tpu.matmul %0, %2, %cst {dimension_numbers = #tpu.dot_dimension_numbers<[1], [0], [0], [1], [0, 0, 1, 1], [], []>} : vector<8x32xf32>, vector<32x64xf32>, vector<8x64xf32> -> vector<8x64xf32>
    %c0_5 = arith.constant 0 : index
    %c0_6 = arith.constant 0 : index
    %4 = vector.load %arg3[%c0_5, %c0_6] : memref<1x64xf32, #tpu.memory_space<vmem>>, vector<1x64xf32>
    %5 = vector.broadcast %4 : vector<1x64xf32> to vector<8x64xf32>
    %6 = arith.addf %3, %5 : vector<8x64xf32>
    %cst_7 = arith.constant 0.000000e+00 : f32
    %7 = vector.broadcast %cst_7 : f32 to vector<8x64xf32>
    %8 = arith.maximumf %6, %7 : vector<8x64xf32>
    %9 = tpu.concatenate %8, %1 in 1 : vector<8x64xf32>, vector<8x64xf32> -> vector<8x128xf32>
    %c0_8 = arith.constant 0 : index
    %c0_9 = arith.constant 0 : index
    %10 = vector.load %arg4[%c0_8, %c0_9] : memref<128x256xf32, #tpu.memory_space<vmem>>, vector<128x256xf32>
    %cst_10 = arith.constant dense<0.000000e+00> : vector<8x256xf32>
    %11 = tpu.matmul %9, %10, %cst_10 {dimension_numbers = #tpu.dot_dimension_numbers<[1], [0], [0], [1], [0, 0, 1, 1], [], []>} : vector<8x128xf32>, vector<128x256xf32>, vector<8x256xf32> -> vector<8x256xf32>
    %c0_11 = arith.constant 0 : index
    %c0_12 = arith.constant 0 : index
    %12 = vector.load %arg5[%c0_11, %c0_12] : memref<1x256xf32, #tpu.memory_space<vmem>>, vector<1x256xf32>
    %13 = vector.broadcast %12 : vector<1x256xf32> to vector<8x256xf32>
    %14 = arith.addf %11, %13 : vector<8x256xf32>
    %15 = vector.extract_strided_slice %14 {offsets = [0, 0], sizes = [8, 64], strides = [1, 1]} : vector<8x256xf32> to vector<8x64xf32>
    %16 = arith.negf %15 : vector<8x64xf32>
    %17 = math.exp %16 : vector<8x64xf32>
    %cst_13 = arith.constant 1.000000e+00 : f32
    %18 = vector.broadcast %cst_13 : f32 to vector<8x64xf32>
    %19 = arith.addf %18, %17 : vector<8x64xf32>
    %20 = arith.divf %18, %19 : vector<8x64xf32>
    %21 = vector.extract_strided_slice %14 {offsets = [0, 64], sizes = [8, 64], strides = [1, 1]} : vector<8x256xf32> to vector<8x64xf32>
    %22 = arith.negf %21 : vector<8x64xf32>
    %23 = math.exp %22 : vector<8x64xf32>
    %cst_14 = arith.constant 1.000000e+00 : f32
    %24 = vector.broadcast %cst_14 : f32 to vector<8x64xf32>
    %25 = arith.addf %24, %23 : vector<8x64xf32>
    %26 = arith.divf %24, %25 : vector<8x64xf32>
    %27 = vector.extract_strided_slice %14 {offsets = [0, 128], sizes = [8, 64], strides = [1, 1]} : vector<8x256xf32> to vector<8x64xf32>
    %28 = vector.extract_strided_slice %14 {offsets = [0, 192], sizes = [8, 64], strides = [1, 1]} : vector<8x256xf32> to vector<8x64xf32>
    %29 = arith.mulf %20, %28 : vector<8x64xf32>
    %30 = arith.addf %27, %29 : vector<8x64xf32>
    %31 = math.tanh %30 : vector<8x64xf32>
    %cst_15 = arith.constant 1.000000e+00 : f32
    %32 = vector.broadcast %cst_15 : f32 to vector<8x64xf32>
    %33 = arith.subf %32, %26 : vector<8x64xf32>
    %34 = arith.mulf %33, %31 : vector<8x64xf32>
    %35 = arith.mulf %26, %1 : vector<8x64xf32>
    %36 = arith.addf %34, %35 : vector<8x64xf32>
    %c0_16 = arith.constant 0 : index
    %c0_17 = arith.constant 0 : index
    %37 = vector.load %arg13[%c0_16, %c0_17] : memref<8x64xf32, #tpu.memory_space<vmem>>, vector<8x64xf32>
    tpu.vector_store %arg13[%c0_16, %c0_17], %36 {strides = array<i32>} : memref<8x64xf32, #tpu.memory_space<vmem>>, vector<8x64xf32>,
    %c0_18 = arith.constant 0 : index
    %c0_19 = arith.constant 0 : index
    %38 = vector.load %arg6[%c0_18, %c0_19] : memref<64x208xf32, #tpu.memory_space<vmem>>, vector<64x208xf32>
    %cst_20 = arith.constant dense<0.000000e+00> : vector<8x208xf32>
    %39 = tpu.matmul %36, %38, %cst_20 {dimension_numbers = #tpu.dot_dimension_numbers<[1], [0], [0], [1], [0, 0, 1, 1], [], []>} : vector<8x64xf32>, vector<64x208xf32>, vector<8x208xf32> -> vector<8x208xf32>
    %c0_21 = arith.constant 0 : index
    %c0_22 = arith.constant 0 : index
    %40 = vector.load %arg7[%c0_21, %c0_22] : memref<1x208xf32, #tpu.memory_space<vmem>>, vector<1x208xf32>
    %41 = vector.broadcast %40 : vector<1x208xf32> to vector<8x208xf32>
    %42 = arith.addf %39, %41 : vector<8x208xf32>
    %43 = vector.extract_strided_slice %42 {offsets = [0, 0], sizes = [8, 128], strides = [1, 1]} : vector<8x208xf32> to vector<8x128xf32>
    %44 = vector.extract_strided_slice %42 {offsets = [0, 128], sizes = [8, 64], strides = [1, 1]} : vector<8x208xf32> to vector<8x64xf32>
    %cst_23 = arith.constant 0.000000e+00 : f32
    %45 = vector.broadcast %cst_23 : f32 to vector<8x64xf32>
    %46 = arith.maximumf %44, %45 : vector<8x64xf32>
    %47 = vector.extract_strided_slice %42 {offsets = [0, 192], sizes = [8, 16], strides = [1, 1]} : vector<8x208xf32> to vector<8x16xf32>
    %c0_24 = arith.constant 0 : index
    %c0_25 = arith.constant 0 : index
    %48 = vector.load %arg10[%c0_24, %c0_25] : memref<8x128xf32, #tpu.memory_space<vmem>>, vector<8x128xf32>
    %49 = arith.mulf %43, %48 : vector<8x128xf32>
    %c0_26 = arith.constant 0 : index
    %c0_27 = arith.constant 0 : index
    %50 = vector.load %arg11[%c0_26, %c0_27] : memref<128x16xf32, #tpu.memory_space<vmem>>, vector<128x16xf32>
    %cst_28 = arith.constant dense<0.000000e+00> : vector<8x16xf32>
    %51 = tpu.matmul %49, %50, %cst_28 {dimension_numbers = #tpu.dot_dimension_numbers<[1], [0], [0], [1], [0, 0, 1, 1], [], []>} : vector<8x128xf32>, vector<128x16xf32>, vector<8x16xf32> -> vector<8x16xf32>
    %c0_29 = arith.constant 0 : index
    %c0_30 = arith.constant 0 : index
    %52 = vector.load %arg8[%c0_29, %c0_30] : memref<64x16xf32, #tpu.memory_space<vmem>>, vector<64x16xf32>
    %cst_31 = arith.constant dense<0.000000e+00> : vector<8x16xf32>
    %53 = tpu.matmul %46, %52, %cst_31 {dimension_numbers = #tpu.dot_dimension_numbers<[1], [0], [0], [1], [0, 0, 1, 1], [], []>} : vector<8x64xf32>, vector<64x16xf32>, vector<8x16xf32> -> vector<8x16xf32>
    %c0_32 = arith.constant 0 : index
    %c0_33 = arith.constant 0 : index
    %54 = vector.load %arg9[%c0_32, %c0_33] : memref<1x16xf32, #tpu.memory_space<vmem>>, vector<1x16xf32>
    %55 = vector.broadcast %54 : vector<1x16xf32> to vector<8x16xf32>
    %56 = arith.addf %53, %55 : vector<8x16xf32>
    %c0_34 = arith.constant 0 : index
    %c0_35 = arith.constant 0 : index
    %57 = vector.load %arg14[%c0_34, %c0_35] : memref<8x16xf32, #tpu.memory_space<vmem>>, vector<8x16xf32>
    tpu.vector_store %arg14[%c0_34, %c0_35], %51 {strides = array<i32>} : memref<8x16xf32, #tpu.memory_space<vmem>>, vector<8x16xf32>,
    %c0_36 = arith.constant 0 : index
    %c0_37 = arith.constant 0 : index
    %58 = vector.load %arg15[%c0_36, %c0_37] : memref<8x16xf32, #tpu.memory_space<vmem>>, vector<8x16xf32>
    tpu.vector_store %arg15[%c0_36, %c0_37], %56 {strides = array<i32>} : memref<8x16xf32, #tpu.memory_space<vmem>>, vector<8x16xf32>,
    %59 = arith.addf %47, %51 : vector<8x16xf32>
    %60 = arith.addf %59, %56 : vector<8x16xf32>
    %c0_38 = arith.constant 0 : index
    %c0_39 = arith.constant 0 : index
    %61 = vector.load %arg12[%c0_38, %c0_39] : memref<8x16xf32, #tpu.memory_space<vmem>>, vector<8x16xf32>
    tpu.vector_store %arg12[%c0_38, %c0_39], %60 {strides = array<i32>} : memref<8x16xf32, #tpu.memory_space<vmem>>, vector<8x16xf32>,
    return
  }
}

</mosaic_0001>

<llo_original>
// kernel: tpu_custom_call.1
$region0: #{tpu_custom_call.1}
  #allocation0 [shape = 'u32[]', space=smem, size = 0x4, offset = 0x4, fixed_abs, tag = 'smem constant byte address 0x4 - core index']
  #allocation1 [shape = 'u32[144,128]{1,0:T(1,128)}', space=vmem, size = 0x12000, scoped, tag = 'internal scratch']
  %s0 = inlined_call_operand.vmem [shape: f32[8,32], index: 0, kind: input, shape index: {}]
  %s1 = inlined_call_operand.vmem [shape: f32[8,64], index: 1, kind: input, shape index: {}]
  %s2 = inlined_call_operand.vmem [shape: f32[32,64], index: 2, kind: input, shape index: {}]
  %s3 = inlined_call_operand.vmem [shape: f32[1,64], index: 3, kind: input, shape index: {}]
  %s4 = inlined_call_operand.hbm [shape: f32[128,256], index: 4, kind: input, shape index: {}]
  %s5 = inlined_call_operand.vmem [shape: f32[1,256], index: 5, kind: input, shape index: {}]
  %s6 = inlined_call_operand.vmem [shape: f32[64,208], index: 6, kind: input, shape index: {}]
  %s7 = inlined_call_operand.vmem [shape: f32[1,208], index: 7, kind: input, shape index: {}]
  %s8 = inlined_call_operand.vmem [shape: f32[64,16], index: 8, kind: input, shape index: {}]
  %s9 = inlined_call_operand.vmem [shape: f32[1,16], index: 9, kind: input, shape index: {}]
  %s10 = inlined_call_operand.vmem [shape: f32[8,128], index: 10, kind: input, shape index: {}]
  %s11 = inlined_call_operand.vmem [shape: f32[128,16], index: 11, kind: input, shape index: {}]
  %s12 = inlined_call_operand.hbm [shape: f32[8,16], index: 12, kind: output, shape index: {0}]
  %s13 = inlined_call_operand.hbm [shape: f32[8,64], index: 13, kind: output, shape index: {1}]
  %s14 = inlined_call_operand.hbm [shape: f32[8,16], index: 14, kind: output, shape index: {2}]
  %s15 = inlined_call_operand.hbm [shape: f32[8,16], index: 15, kind: output, shape index: {3}]
  %16 = xla_tuple %s12, %s13, %s14, %s15
  %s17 = sld [smem:[#allocation0]]
  $region86: #{tpu_custom_call.1} parent=0
    _
  %s19 = ssub.s32 1, %s17
  %s20 = scalar_select 0, %s19, %s17
  $region1: #{tpu_custom_call.1} parent=0
    #allocation2 [shape = 'u8[131072]{0}', space=vmem, size = 0x20000, scoped, tag = 'input window, operand 4, single buffered']
    #allocation3 [shape = 's32[1]{0}', space=sflag, size = 0x4, scoped, tag = 'scoped memory for tpu_custom_call.1']
    #allocation4 [shape = 's32[1]{0}', space=sflag, size = 0x4, scoped, tag = 'scoped memory for tpu_custom_call.1']
    #allocation5 [shape = 'u8[4096]{0}', space=vmem, size = 0x1000, scoped, tag = 'output window, operand 0, single buffered']
    #allocation6 [shape = 'u8[4096]{0}', space=vmem, size = 0x1000, scoped, tag = 'output window, operand 1, single buffered']
    #allocation7 [shape = 's32[1]{0}', space=sflag, size = 0x4, scoped, tag = 'scoped memory for tpu_custom_call.1']
    #allocation8 [shape = 'u8[4096]{0}', space=vmem, size = 0x1000, scoped, tag = 'output window, operand 2, single buffered']
    #allocation9 [shape = 'u8[4096]{0}', space=vmem, size = 0x1000, scoped, tag = 'output window, operand 3, single buffered']
    #allocation10 [shape = 's32[1]{0}', space=sflag, size = 0x4, scoped, tag = 'scoped memory for tpu_custom_call.1']
    %21 = vsyncpa [#allocation3], 0
    %22 = vsyncpa [#allocation4], 0
    %23 = vsyncpa [#allocation7], 0
    %24 = vsyncpa [#allocation10], 0
    // Predicated region
    $region2: #{tpu_custom_call.1} parent=1 // pred_check
      _
    $region3: #{tpu_custom_call.1} parent=1 // pred_check_branch
      %26 = sbr.rel (0) target = $region5
    $region4: #{tpu_custom_call.1} parent=1 // pred_region
      _
    $region5: #{tpu_custom_call.1} parent=1 // pred_fallthru
      _
    // Predicated region
    $region6: #{tpu_custom_call.1} parent=1 // pred_check
      _
    $region7: #{tpu_custom_call.1} parent=1 // pred_check_branch
      %28 = sbr.rel (0) target = $region9
    $region8: #{tpu_custom_call.1} parent=1 // pred_region
      _
    $region9: #{tpu_custom_call.1} parent=1 // pred_fallthru
      _
    // Predicated region
    $region10: #{tpu_custom_call.1} parent=1 // pred_check
      _
    $region11: #{tpu_custom_call.1} parent=1 // pred_check_branch
      %30 = sbr.rel (0) target = $region13
    $region12: #{tpu_custom_call.1} parent=1 // pred_region
      _
    $region13: #{tpu_custom_call.1} parent=1 // pred_fallthru
      _
    // Predicated region
    $region14: #{tpu_custom_call.1} parent=1 // pred_check
      _
    $region15: #{tpu_custom_call.1} parent=1 // pred_check_branch
      %32 = sbr.rel (0) target = $region17
    $region16: #{tpu_custom_call.1} parent=1 // pred_region
      _
    $region17: #{tpu_custom_call.1} parent=1 // pred_fallthru
      _
    // Predicated region
    $region18: #{tpu_custom_call.1} parent=1 // pred_check
      _
    $region19: #{tpu_custom_call.1} parent=1 // pred_check_branch
      %34 = sbr.rel (0) target = $region21
    $region20: #{tpu_custom_call.1} parent=1 // pred_region
      %s36 = ssub.s32 4096, 4096
      %37 = vsyncadd [#allocation3], %s36
      %s38 = sshll.u32 [#allocation2], 4
      %s39 = int_to_ptr.vmem [resolvable:$true] %s38
      %44 = dma.hbm_to_vmem [thread:$0]  %s4, 4096, %s39, [#allocation3], 256, 256, 16
    $region21: #{tpu_custom_call.1} parent=1 // pred_fallthru
      _
    // Predicated region
    $region22: #{tpu_custom_call.1} parent=1 // pred_check
      _
    $region23: #{tpu_custom_call.1} parent=1 // pred_check_branch
      %46 = sbr.rel (0) target = $region25
    $region24: #{tpu_custom_call.1} parent=1 // pred_region
      _
    $region25: #{tpu_custom_call.1} parent=1 // pred_fallthru
      _
    // Predicated region
    $region26: #{tpu_custom_call.1} parent=1 // pred_check
      _
    $region27: #{tpu_custom_call.1} parent=1 // pred_check_branch
      %48 = sbr.rel (0) target = $region29
    $region28: #{tpu_custom_call.1} parent=1 // pred_region
      _
    $region29: #{tpu_custom_call.1} parent=1 // pred_fallthru
      _
    // Predicated region
    $region30: #{tpu_custom_call.1} parent=1 // pred_check
      _
    $region31: #{tpu_custom_call.1} parent=1 // pred_check_branch
      %50 = sbr.rel (0) target = $region33
    $region32: #{tpu_custom_call.1} parent=1 // pred_region
      _
    $region33: #{tpu_custom_call.1} parent=1 // pred_fallthru
      _
    // Predicated region
    $region34: #{tpu_custom_call.1} parent=1 // pred_check
      _
    $region35: #{tpu_custom_call.1} parent=1 // pred_check_branch
      %52 = sbr.rel (0) target = $region37
    $region36: #{tpu_custom_call.1} parent=1 // pred_region
      _
    $region37: #{tpu_custom_call.1} parent=1 // pred_fallthru
      _
    // Predicated region
    $region38: #{tpu_custom_call.1} parent=1 // pred_check
      _
    $region39: #{tpu_custom_call.1} parent=1 // pred_check_branch
      %54 = sbr.rel (0) target = $region41
    $region40: #{tpu_custom_call.1} parent=1 // pred_region
      _
    $region41: #{tpu_custom_call.1} parent=1 // pred_fallthru
      _
    // Predicated region
    $region42: #{tpu_custom_call.1} parent=1 // pred_check
      _
    $region43: #{tpu_custom_call.1} parent=1 // pred_check_branch
      %56 = sbr.rel (0) target = $region45
    $region44: #{tpu_custom_call.1} parent=1 // pred_region
      _
    $region45: #{tpu_custom_call.1} parent=1 // pred_fallthru
      _
    // Predicated region
    $region46: #{tpu_custom_call.1} parent=1 // pred_check
      _
    $region47: #{tpu_custom_call.1} parent=1 // pred_check_branch
      %58 = sbr.rel (0) target = $region49
    $region48: #{tpu_custom_call.1} parent=1 // pred_region
      _
    $region49: #{tpu_custom_call.1} parent=1 // pred_fallthru
      _
    // Predicated region
    $region50: #{tpu_custom_call.1} parent=1 // pred_check
      _
    $region51: #{tpu_custom_call.1} parent=1 // pred_check_branch
      %60 = sbr.rel (0) target = $region53
    $region52: #{tpu_custom_call.1} parent=1 // pred_region
      %61 = dma.done [#allocation3], 4096
    $region53: #{tpu_custom_call.1} parent=1 // pred_fallthru
      _
    %v62 = vld [vmem:[%s0] sm:$0xff]
    %v63 = vld [vmem:[%s1] sm:$0xff]
    %v64 = vld [vmem:[%s2] sm:$0xff]
    %v65 = vld [vmem:[%s2 + $0x8] sm:$0xff]
    %v66 = vld [vmem:[%s2 + $0x10] sm:$0xff]
    %v67 = vld [vmem:[%s2 + $0x18] sm:$0xff]
    %v68 = vld [vmem:[%s3] sm:$0x1]
    %v70 = vlaneseq
    %v71 = vshrl.u32 %v70, 7
    %v72 = vsub.s32 0, %v71
    %v73 = vrot.slane %v68, %v72
    %vm75 = vcmask 261120
    %v77 = vsel %vm75, %v62, 0
    %79 = vmatprep.subr.mxu0 0.0
    %80 = vmatpush1.msra.mxu0 0.0
    %81 = vmatprep.subr.mxu0 0.0
    %82 = vmatpush1.msra.mxu0 0.0
    %83 = vmatprep.subr.mxu0 0.0
    %84 = vmatpush1.msra.mxu0 0.0
    %85 = vmatprep.subr.mxu0 0.0
    %86 = vmatpush1.msra.mxu0 0.0
    %87 = vmatprep.subr.mxu0 0.0
    %88 = vmatpush1.msra.mxu0 0.0
    %89 = vmatprep.subr.mxu0 0.0
    %90 = vmatpush1.msra.mxu0 0.0
    %91 = vmatprep.subr.mxu0 0.0
    %92 = vmatpush1.msra.mxu0 0.0
    %93 = vmatprep.subr.mxu0 0.0
    %94 = vmatpush1.msra.mxu0 0.0
    %95 = vmatprep.subr.mxu0 0.0
    %96 = vmatpush1.msra.mxu0 0.0
    %97 = vmatprep.subr.mxu0 0.0
    %98 = vmatpush1.msra.mxu0 0.0
    %99 = vmatprep.subr.mxu0 0.0
    %100 = vmatpush1.msra.mxu0 0.0
    %101 = vmatprep.subr.mxu0 0.0
    %102 = vmatpush1.msra.mxu0 0.0
    %103 = vmatprep.subr.mxu0 0.0
    %104 = vmatpush1.msra.mxu0 %v67
    %105 = vmatprep.subr.mxu0 0.0
    %106 = vmatpush1.msra.mxu0 %v66
    %107 = vmatprep.subr.mxu0 0.0
    %108 = vmatpush1.msra.mxu0 %v65
    %109 = vmatprep.subr.mxu0 0.0
    %110 = vmatpush1.msra.mxu0 %v64
    %111 = vmatprep.subr.mxu0 0.0
    %112 = vmatpush2.msra.mxu0 0.0
    %113 = vmatprep.subr.mxu0 0.0
    %114 = vmatpush2.msra.mxu0 0.0
    %115 = vmatprep.subr.mxu0 0.0
    %116 = vmatpush2.msra.mxu0 0.0
    %117 = vmatprep.subr.mxu0 0.0
    %118 = vmatpush2.msra.mxu0 0.0
    %119 = vmatprep.subr.mxu0 0.0
    %120 = vmatpush2.msra.mxu0 0.0
    %121 = vmatprep.subr.mxu0 0.0
    %122 = vmatpush2.msra.mxu0 0.0
    %123 = vmatprep.subr.mxu0 0.0
    %124 = vmatpush2.msra.mxu0 0.0
    %125 = vmatprep.subr.mxu0 0.0
    %126 = vmatpush2.msra.mxu0 0.0
    %127 = vmatprep.subr.mxu0 0.0
    %128 = vmatpush2.msra.mxu0 0.0
    %129 = vmatprep.subr.mxu0 0.0
    %130 = vmatpush2.msra.mxu0 0.0
    %131 = vmatprep.subr.mxu0 0.0
    %132 = vmatpush2.msra.mxu0 0.0
    %133 = vmatprep.subr.mxu0 0.0
    %134 = vmatpush2.msra.mxu0 0.0
    %135 = vmatprep.subr.mxu0 0.0
    %136 = vmatpush2.msra.mxu0 0.0
    %137 = vmatprep.subr.mxu0 0.0
    %138 = vmatpush2.msra.mxu0 0.0
    %139 = vmatprep.subr.mxu0 0.0
    %140 = vmatpush2.msra.mxu0 0.0
    %141 = vmatprep.subr.mxu0 0.0
    %142 = vmatpush2.msra.mxu0 0.0
    %143 = vmatprep.mubr.f32.mxu0 0.0
    %144 = vmatmul.mubr.f32.gmra.mxu0 %v77
    %v145 = vpop.f32.mrf.mxu0
    %v146 = vadd.f32 %v73, %v145
    %v147 = vpop.f32.mrf.mxu0
    %148 = vdwg.mxu0
    %v149 = vmax.f32 %v146, 0.0
    %151 = vrot.lane.b32.xlu0 %v63, 64
    %v152 = vpop.permute.xlu0 %151
    %vm154 = vcmask 523264
    %v155 = vsel %vm154, %v149, %v152
    %v156 = vld [vmem:[#allocation2] sm:$0xff]
    %v157 = vld [vmem:[#allocation2 + $0x8] sm:$0xff]
    %v158 = vld [vmem:[#allocation2 + $0x10] sm:$0xff]
    %v159 = vld [vmem:[#allocation2 + $0x18] sm:$0xff]
    %v160 = vld [vmem:[#allocation2 + $0x20] sm:$0xff]
    %v161 = vld [vmem:[#allocation2 + $0x28] sm:$0xff]
    %v162 = vld [vmem:[#allocation2 + $0x30] sm:$0xff]
    %v163 = vld [vmem:[#allocation2 + $0x38] sm:$0xff]
    %v164 = vld [vmem:[#allocation2 + $0x40] sm:$0xff]
    %v165 = vld [vmem:[#allocation2 + $0x48] sm:$0xff]
    %v166 = vld [vmem:[#allocation2 + $0x50] sm:$0xff]
    %v167 = vld [vmem:[#allocation2 + $0x58] sm:$0xff]
    %v168 = vld [vmem:[#allocation2 + $0x60] sm:$0xff]
    %v169 = vld [vmem:[#allocation2 + $0x68] sm:$0xff]
    %v170 = vld [vmem:[#allocation2 + $0x70] sm:$0xff]
    %v171 = vld [vmem:[#allocation2 + $0x78] sm:$0xff]
    %v172 = vld [vmem:[#allocation2 + $0x80] sm:$0xff]
    %v173 = vld [vmem:[#allocation2 + $0x88] sm:$0xff]
    %v174 = vld [vmem:[#allocation2 + $0x90] sm:$0xff]
    %v175 = vld [vmem:[#allocation2 + $0x98] sm:$0xff]
    %v176 = vld [vmem:[#allocation2 + $0xa0] sm:$0xff]
    %v177 = vld [vmem:[#allocation2 + $0xa8] sm:$0xff]
    %v178 = vld [vmem:[#allocation2 + $0xb0] sm:$0xff]
    %v179 = vld [vmem:[#allocation2 + $0xb8] sm:$0xff]
    %v180 = vld [vmem:[#allocation2 + $0xc0] sm:$0xff]
    %v181 = vld [vmem:[#allocation2 + $0xc8] sm:$0xff]
    %v182 = vld [vmem:[#allocation2 + $0xd0] sm:$0xff]
    %v183 = vld [vmem:[#allocation2 + $0xd8] sm:$0xff]
    %v184 = vld [vmem:[#allocation2 + $0xe0] sm:$0xff]
    %v185 = vld [vmem:[#allocation2 + $0xe8] sm:$0xff]
    %v186 = vld [vmem:[#allocation2 + $0xf0] sm:$0xff]
    %v187 = vld [vmem:[#allocation2 + $0xf8] sm:$0xff]
    %v188 = vld [vmem:[%s5] sm:$0x3]
    %v190 = vlaneseq
    %v191 = vshrl.u32 %v190, 7
    %v192 = vsub.s32 0, %v191
    %v193 = vrot.slane %v188, %v192
    %v194 = vlaneseq
    %v195 = vshrl.u32 %v194, 7
    %v196 = vsub.s32 1, %v195
    %v197 = vrot.slane %v188, %v196
    %200 = vmatprep.subr.mxu0 %v187
    %201 = vmatpush1.msra.mxu0 %v186
    %202 = vmatprep.subr.mxu0 %v185
    %203 = vmatpush1.msra.mxu0 %v184
    %204 = vmatprep.subr.mxu0 %v183
    %205 = vmatpush1.msra.mxu0 %v182
    %206 = vmatprep.subr.mxu0 %v181
    %207 = vmatpush1.msra.mxu0 %v180
    %208 = vmatprep.subr.mxu0 %v179
    %209 = vmatpush1.msra.mxu0 %v178
    %210 = vmatprep.subr.mxu0 %v177
    %211 = vmatpush1.msra.mxu0 %v176
    %212 = vmatprep.subr.mxu0 %v175
    %213 = vmatpush1.msra.mxu0 %v174
    %214 = vmatprep.subr.mxu0 %v173
    %215 = vmatpush1.msra.mxu0 %v172
    %216 = vmatprep.subr.mxu0 %v171
    %217 = vmatpush1.msra.mxu0 %v170
    %218 = vmatprep.subr.mxu0 %v169
    %219 = vmatpush1.msra.mxu0 %v168
    %220 = vmatprep.subr.mxu0 %v167
    %221 = vmatpush1.msra.mxu0 %v166
    %222 = vmatprep.subr.mxu0 %v165
    %223 = vmatpush1.msra.mxu0 %v164
    %224 = vmatprep.subr.mxu0 %v163
    %225 = vmatpush1.msra.mxu0 %v162
    %226 = vmatprep.subr.mxu0 %v161
    %227 = vmatpush1.msra.mxu0 %v160
    %228 = vmatprep.subr.mxu0 %v159
    %229 = vmatpush1.msra.mxu0 %v158
    %230 = vmatprep.subr.mxu0 %v157
    %231 = vmatpush1.msra.mxu0 %v156
    %232 = vmatprep.subr.mxu0 0.0
    %233 = vmatpush2.msra.mxu0 0.0
    %234 = vmatprep.subr.mxu0 0.0
    %235 = vmatpush2.msra.mxu0 0.0
    %236 = vmatprep.subr.mxu0 0.0
    %237 = vmatpush2.msra.mxu0 0.0
    %238 = vmatprep.subr.mxu0 0.0
    %239 = vmatpush2.msra.mxu0 0.0
    %240 = vmatprep.subr.mxu0 0.0
    %241 = vmatpush2.msra.mxu0 0.0
    %242 = vmatprep.subr.mxu0 0.0
    %243 = vmatpush2.msra.mxu0 0.0
    %244 = vmatprep.subr.mxu0 0.0
    %245 = vmatpush2.msra.mxu0 0.0
    %246 = vmatprep.subr.mxu0 0.0
    %247 = vmatpush2.msra.mxu0 0.0
    %248 = vmatprep.subr.mxu0 0.0
    %249 = vmatpush2.msra.mxu0 0.0
    %250 = vmatprep.subr.mxu0 0.0
    %251 = vmatpush2.msra.mxu0 0.0
    %252 = vmatprep.subr.mxu0 0.0
    %253 = vmatpush2.msra.mxu0 0.0
    %254 = vmatprep.subr.mxu0 0.0
    %255 = vmatpush2.msra.mxu0 0.0
    %256 = vmatprep.subr.mxu0 0.0
    %257 = vmatpush2.msra.mxu0 0.0
    %258 = vmatprep.subr.mxu0 0.0
    %259 = vmatpush2.msra.mxu0 0.0
    %260 = vmatprep.subr.mxu0 0.0
    %261 = vmatpush2.msra.mxu0 0.0
    %262 = vmatprep.subr.mxu0 0.0
    %263 = vmatpush2.msra.mxu0 0.0
    %264 = vmatprep.mubr.f32.mxu0 0.0
    %265 = vmatmul.mubr.f32.gmra.mxu0 %v155
    %v266 = vpop.f32.mrf.mxu0
    %v267 = vadd.f32 %v193, %v266
    %v268 = vpop.f32.mrf.mxu0
    %v269 = vadd.f32 %v197, %v268
    %270 = vdwg.mxu0
    %v271 = vxor.u32 %v267, 2147483648
    %v272 = vmul.f32 %v271, 1.442695
    %v273 = vpow.pop %v272
    %v274 = vadd.f32 %v273, 1.0
    %v275 = vrcp.pop %v274
    %v276 = vmul.f32 1.0, %v275
    %278 = vrot.lane.b32.xlu0 %v269, 64
    %v279 = vpop.permute.xlu0 %278
    %v281 = vmul.f32 %v276, %v279
    %v282 = vadd.f32 %v269, %v281
    %v283 = vtanh.pop %v282
    %v284 = vsub.f32 1.0, %v276
    %286 = vrot.lane.b32.xlu0 %v283, 64
    %v287 = vpop.permute.xlu0 %286
    %v289 = vmul.f32 %v284, %v287
    %v290 = vmul.f32 %v276, %v152
    %v291 = vadd.f32 %v289, %v290
    %293 = vrot.lane.b32.xlu0 %v291, 64
    %v294 = vpop.permute.xlu0 %293
    %296 = vst.msk [vmem:[#allocation6] sm:$0xff] %vm154, %v294
    %v297 = vld [vmem:[%s6] sm:$0xff]
    %v298 = vld [vmem:[%s6 + $0x8] sm:$0xff]
    %v299 = vld [vmem:[%s6 + $0x10] sm:$0xff]
    %v300 = vld [vmem:[%s6 + $0x18] sm:$0xff]
    %v301 = vld [vmem:[%s6 + $0x20] sm:$0xff]
    %v302 = vld [vmem:[%s6 + $0x28] sm:$0xff]
    %v303 = vld [vmem:[%s6 + $0x30] sm:$0xff]
    %v304 = vld [vmem:[%s6 + $0x38] sm:$0xff]
    %v305 = vld [vmem:[%s6 + $0x40] sm:$0xff]
    %v306 = vld [vmem:[%s6 + $0x48] sm:$0xff]
    %v307 = vld [vmem:[%s6 + $0x50] sm:$0xff]
    %v308 = vld [vmem:[%s6 + $0x58] sm:$0xff]
    %v309 = vld [vmem:[%s6 + $0x60] sm:$0xff]
    %v310 = vld [vmem:[%s6 + $0x68] sm:$0xff]
    %v311 = vld [vmem:[%s6 + $0x70] sm:$0xff]
    %v312 = vld [vmem:[%s6 + $0x78] sm:$0xff]
    %v313 = vld [vmem:[%s7] sm:$0x3]
    %v315 = vlaneseq
    %v316 = vshrl.u32 %v315, 7
    %v317 = vsub.s32 0, %v316
    %v318 = vrot.slane %v313, %v317
    %v319 = vlaneseq
    %v320 = vshrl.u32 %v319, 7
    %v321 = vsub.s32 1, %v320
    %v322 = vrot.slane %v313, %v321
    %v325 = vsel %vm154, %v294, 0
    %327 = vmatprep.subr.mxu0 0.0
    %328 = vmatpush1.msra.mxu0 0.0
    %329 = vmatprep.subr.mxu0 0.0
    %330 = vmatpush1.msra.mxu0 0.0
    %331 = vmatprep.subr.mxu0 0.0
    %332 = vmatpush1.msra.mxu0 0.0
    %333 = vmatprep.subr.mxu0 0.0
    %334 = vmatpush1.msra.mxu0 0.0
    %335 = vmatprep.subr.mxu0 0.0
    %336 = vmatpush1.msra.mxu0 0.0
    %337 = vmatprep.subr.mxu0 0.0
    %338 = vmatpush1.msra.mxu0 0.0
    %339 = vmatprep.subr.mxu0 0.0
    %340 = vmatpush1.msra.mxu0 0.0
    %341 = vmatprep.subr.mxu0 0.0
    %342 = vmatpush1.msra.mxu0 0.0
    %343 = vmatprep.subr.mxu0 %v312
    %344 = vmatpush1.msra.mxu0 %v311
    %345 = vmatprep.subr.mxu0 %v310
    %346 = vmatpush1.msra.mxu0 %v309
    %347 = vmatprep.subr.mxu0 %v308
    %348 = vmatpush1.msra.mxu0 %v307
    %349 = vmatprep.subr.mxu0 %v306
    %350 = vmatpush1.msra.mxu0 %v305
    %351 = vmatprep.subr.mxu0 %v304
    %352 = vmatpush1.msra.mxu0 %v303
    %353 = vmatprep.subr.mxu0 %v302
    %354 = vmatpush1.msra.mxu0 %v301
    %355 = vmatprep.subr.mxu0 %v300
    %356 = vmatpush1.msra.mxu0 %v299
    %357 = vmatprep.subr.mxu0 %v298
    %358 = vmatpush1.msra.mxu0 %v297
    %359 = vmatprep.subr.mxu0 0.0
    %360 = vmatpush2.msra.mxu0 0.0
    %361 = vmatprep.subr.mxu0 0.0
    %362 = vmatpush2.msra.mxu0 0.0
    %363 = vmatprep.subr.mxu0 0.0
    %364 = vmatpush2.msra.mxu0 0.0
    %365 = vmatprep.subr.mxu0 0.0
    %366 = vmatpush2.msra.mxu0 0.0
    %367 = vmatprep.subr.mxu0 0.0
    %368 = vmatpush2.msra.mxu0 0.0
    %369 = vmatprep.subr.mxu0 0.0
    %370 = vmatpush2.msra.mxu0 0.0
    %371 = vmatprep.subr.mxu0 0.0
    %372 = vmatpush2.msra.mxu0 0.0
    %373 = vmatprep.subr.mxu0 0.0
    %374 = vmatpush2.msra.mxu0 0.0
    %375 = vmatprep.subr.mxu0 0.0
    %376 = vmatpush2.msra.mxu0 0.0
    %377 = vmatprep.subr.mxu0 0.0
    %378 = vmatpush2.msra.mxu0 0.0
    %379 = vmatprep.subr.mxu0 0.0
    %380 = vmatpush2.msra.mxu0 0.0
    %381 = vmatprep.subr.mxu0 0.0
    %382 = vmatpush2.msra.mxu0 0.0
    %383 = vmatprep.subr.mxu0 0.0
    %384 = vmatpush2.msra.mxu0 0.0
    %385 = vmatprep.subr.mxu0 0.0
    %386 = vmatpush2.msra.mxu0 0.0
    %387 = vmatprep.subr.mxu0 0.0
    %388 = vmatpush2.msra.mxu0 0.0
    %389 = vmatprep.subr.mxu0 0.0
    %390 = vmatpush2.msra.mxu0 0.0
    %391 = vmatprep.mubr.f32.mxu0 0.0
    %392 = vmatmul.mubr.f32.gmra.mxu0 %v325
    %v393 = vpop.f32.mrf.mxu0
    %v394 = vadd.f32 %v318, %v393
    %v395 = vpop.f32.mrf.mxu0
    %v396 = vadd.f32 %v322, %v395
    %397 = vdwg.mxu0
    %v398 = vmax.f32 %v396, 0.0
    %v399 = vld [vmem:[%s10] sm:$0xff]
    %v400 = vmul.f32 %v394, %v399
    %v401 = vld [vmem:[%s11] sm:$0xff]
    %v402 = vld [vmem:[%s11 + $0x8] sm:$0xff]
    %v403 = vld [vmem:[%s11 + $0x10] sm:$0xff]
    %v404 = vld [vmem:[%s11 + $0x18] sm:$0xff]
    %v405 = vld [vmem:[%s11 + $0x20] sm:$0xff]
    %v406 = vld [vmem:[%s11 + $0x28] sm:$0xff]
    %v407 = vld [vmem:[%s11 + $0x30] sm:$0xff]
    %v408 = vld [vmem:[%s11 + $0x38] sm:$0xff]
    %v409 = vld [vmem:[%s11 + $0x40] sm:$0xff]
    %v410 = vld [vmem:[%s11 + $0x48] sm:$0xff]
    %v411 = vld [vmem:[%s11 + $0x50] sm:$0xff]
    %v412 = vld [vmem:[%s11 + $0x58] sm:$0xff]
    %v413 = vld [vmem:[%s11 + $0x60] sm:$0xff]
    %v414 = vld [vmem:[%s11 + $0x68] sm:$0xff]
    %v415 = vld [vmem:[%s11 + $0x70] sm:$0xff]
    %v416 = vld [vmem:[%s11 + $0x78] sm:$0xff]
    %417 = vmatprep.subr.mxu0 0.0
    %418 = vmatpush1.msra.mxu0 %v416
    %419 = vmatprep.subr.mxu0 0.0
    %420 = vmatpush1.msra.mxu0 %v415
    %421 = vmatprep.subr.mxu0 0.0
    %422 = vmatpush1.msra.mxu0 %v414
    %423 = vmatprep.subr.mxu0 0.0
    %424 = vmatpush1.msra.mxu0 %v413
    %425 = vmatprep.subr.mxu0 0.0
    %426 = vmatpush1.msra.mxu0 %v412
    %427 = vmatprep.subr.mxu0 0.0
    %428 = vmatpush1.msra.mxu0 %v411
    %429 = vmatprep.subr.mxu0 0.0
    %430 = vmatpush1.msra.mxu0 %v410
    %431 = vmatprep.subr.mxu0 0.0
    %432 = vmatpush1.msra.mxu0 %v409
    %433 = vmatprep.subr.mxu0 0.0
    %434 = vmatpush1.msra.mxu0 %v408
    %435 = vmatprep.subr.mxu0 0.0
    %436 = vmatpush1.msra.mxu0 %v407
    %437 = vmatprep.subr.mxu0 0.0
    %438 = vmatpush1.msra.mxu0 %v406
    %439 = vmatprep.subr.mxu0 0.0
    %440 = vmatpush1.msra.mxu0 %v405
    %441 = vmatprep.subr.mxu0 0.0
    %442 = vmatpush1.msra.mxu0 %v404
    %443 = vmatprep.subr.mxu0 0.0
    %444 = vmatpush1.msra.mxu0 %v403
    %445 = vmatprep.subr.mxu0 0.0
    %446 = vmatpush1.msra.mxu0 %v402
    %447 = vmatprep.subr.mxu0 0.0
    %448 = vmatpush1.msra.mxu0 %v401
    %449 = vmatprep.subr.mxu0 0.0
    %450 = vmatpush2.msra.mxu0 0.0
    %451 = vmatprep.subr.mxu0 0.0
    %452 = vmatpush2.msra.mxu0 0.0
    %453 = vmatprep.subr.mxu0 0.0
    %454 = vmatpush2.msra.mxu0 0.0
    %455 = vmatprep.subr.mxu0 0.0
    %456 = vmatpush2.msra.mxu0 0.0
    %457 = vmatprep.subr.mxu0 0.0
    %458 = vmatpush2.msra.mxu0 0.0
    %459 = vmatprep.subr.mxu0 0.0
    %460 = vmatpush2.msra.mxu0 0.0
    %461 = vmatprep.subr.mxu0 0.0
    %462 = vmatpush2.msra.mxu0 0.0
    %463 = vmatprep.subr.mxu0 0.0
    %464 = vmatpush2.msra.mxu0 0.0
    %465 = vmatprep.subr.mxu0 0.0
    %466 = vmatpush2.msra.mxu0 0.0
    %467 = vmatprep.subr.mxu0 0.0
    %468 = vmatpush2.msra.mxu0 0.0
    %469 = vmatprep.subr.mxu0 0.0
    %470 = vmatpush2.msra.mxu0 0.0
    %471 = vmatprep.subr.mxu0 0.0
    %472 = vmatpush2.msra.mxu0 0.0
    %473 = vmatprep.subr.mxu0 0.0
    %474 = vmatpush2.msra.mxu0 0.0
    %475 = vmatprep.subr.mxu0 0.0
    %476 = vmatpush2.msra.mxu0 0.0
    %477 = vmatprep.subr.mxu0 0.0
    %478 = vmatpush2.msra.mxu0 0.0
    %479 = vmatprep.subr.mxu0 0.0
    %480 = vmatpush2.msra.mxu0 0.0
    %481 = vmatprep.mubr.f32.mxu0 0.0
    %482 = vmatmul.mubr.f32.gmra.mxu0 %v400
    %v483 = vpop.f32.mrf.mxu0
    %v484 = vadd.f32 0.0, %v483
    %v485 = vpop.f32.mrf.mxu0
    %486 = vdwg.mxu0
    %v487 = vld [vmem:[%s8] sm:$0xff]
    %v488 = vld [vmem:[%s8 + $0x8] sm:$0xff]
    %v489 = vld [vmem:[%s8 + $0x10] sm:$0xff]
    %v490 = vld [vmem:[%s8 + $0x18] sm:$0xff]
    %v491 = vld [vmem:[%s8 + $0x20] sm:$0xff]
    %v492 = vld [vmem:[%s8 + $0x28] sm:$0xff]
    %v493 = vld [vmem:[%s8 + $0x30] sm:$0xff]
    %v494 = vld [vmem:[%s8 + $0x38] sm:$0xff]
    %v495 = vld [vmem:[%s9] sm:$0x1]
    %v497 = vlaneseq
    %v498 = vshrl.u32 %v497, 7
    %v499 = vsub.s32 0, %v498
    %v500 = vrot.slane %v495, %v499
    %v503 = vsel %vm154, %v398, 0
    %505 = vmatprep.subr.mxu0 0.0
    %506 = vmatpush1.msra.mxu0 0.0
    %507 = vmatprep.subr.mxu0 0.0
    %508 = vmatpush1.msra.mxu0 0.0
    %509 = vmatprep.subr.mxu0 0.0
    %510 = vmatpush1.msra.mxu0 0.0
    %511 = vmatprep.subr.mxu0 0.0
    %512 = vmatpush1.msra.mxu0 0.0
    %513 = vmatprep.subr.mxu0 0.0
    %514 = vmatpush1.msra.mxu0 0.0
    %515 = vmatprep.subr.mxu0 0.0
    %516 = vmatpush1.msra.mxu0 0.0
    %517 = vmatprep.subr.mxu0 0.0
    %518 = vmatpush1.msra.mxu0 0.0
    %519 = vmatprep.subr.mxu0 0.0
    %520 = vmatpush1.msra.mxu0 0.0
    %521 = vmatprep.subr.mxu0 0.0
    %522 = vmatpush1.msra.mxu0 %v494
    %523 = vmatprep.subr.mxu0 0.0
    %524 = vmatpush1.msra.mxu0 %v493
    %525 = vmatprep.subr.mxu0 0.0
    %526 = vmatpush1.msra.mxu0 %v492
    %527 = vmatprep.subr.mxu0 0.0
    %528 = vmatpush1.msra.mxu0 %v491
    %529 = vmatprep.subr.mxu0 0.0
    %530 = vmatpush1.msra.mxu0 %v490
    %531 = vmatprep.subr.mxu0 0.0
    %532 = vmatpush1.msra.mxu0 %v489
    %533 = vmatprep.subr.mxu0 0.0
    %534 = vmatpush1.msra.mxu0 %v488
    %535 = vmatprep.subr.mxu0 0.0
    %536 = vmatpush1.msra.mxu0 %v487
    %537 = vmatprep.subr.mxu0 0.0
    %538 = vmatpush2.msra.mxu0 0.0
    %539 = vmatprep.subr.mxu0 0.0
    %540 = vmatpush2.msra.mxu0 0.0
    %541 = vmatprep.subr.mxu0 0.0
    %542 = vmatpush2.msra.mxu0 0.0
    %543 = vmatprep.subr.mxu0 0.0
    %544 = vmatpush2.msra.mxu0 0.0
    %545 = vmatprep.subr.mxu0 0.0
    %546 = vmatpush2.msra.mxu0 0.0
    %547 = vmatprep.subr.mxu0 0.0
    %548 = vmatpush2.msra.mxu0 0.0
    %549 = vmatprep.subr.mxu0 0.0
    %550 = vmatpush2.msra.mxu0 0.0
    %551 = vmatprep.subr.mxu0 0.0
    %552 = vmatpush2.msra.mxu0 0.0
    %553 = vmatprep.subr.mxu0 0.0
    %554 = vmatpush2.msra.mxu0 0.0
    %555 = vmatprep.subr.mxu0 0.0
    %556 = vmatpush2.msra.mxu0 0.0
    %557 = vmatprep.subr.mxu0 0.0
    %558 = vmatpush2.msra.mxu0 0.0
    %559 = vmatprep.subr.mxu0 0.0
    %560 = vmatpush2.msra.mxu0 0.0
    %561 = vmatprep.subr.mxu0 0.0
    %562 = vmatpush2.msra.mxu0 0.0
    %563 = vmatprep.subr.mxu0 0.0
    %564 = vmatpush2.msra.mxu0 0.0
    %565 = vmatprep.subr.mxu0 0.0
    %566 = vmatpush2.msra.mxu0 0.0
    %567 = vmatprep.subr.mxu0 0.0
    %568 = vmatpush2.msra.mxu0 0.0
    %569 = vmatprep.mubr.f32.mxu0 0.0
    %570 = vmatmul.mubr.f32.gmra.mxu0 %v503
    %v571 = vpop.f32.mrf.mxu0
    %v572 = vadd.f32 %v500, %v571
    %v573 = vpop.f32.mrf.mxu0
    %574 = vdwg.mxu0
    %vm575 = vcmask 130048
    %576 = vst.msk [vmem:[#allocation8] sm:$0xff] %vm575, %v484
    %577 = vst.msk [vmem:[#allocation9] sm:$0xff] %vm575, %v572
    %579 = vrot.lane.b32.xlu0 %v484, 64
    %v580 = vpop.permute.xlu0 %579
    %v582 = vadd.f32 %v396, %v580
    %584 = vrot.lane.b32.xlu0 %v572, 64
    %v585 = vpop.permute.xlu0 %584
    %v587 = vadd.f32 %v582, %v585
    %589 = vrot.lane.b32.xlu0 %v587, 64
    %v590 = vpop.permute.xlu0 %589
    %592 = vst.msk [vmem:[#allocation5] sm:$0xff] %vm575, %v590
    // Predicated region
    $region54: #{tpu_custom_call.1} parent=1 // pred_check
      _
    $region55: #{tpu_custom_call.1} parent=1 // pred_check_branch
      %594 = sbr.rel (0) target = $region57
    $region56: #{tpu_custom_call.1} parent=1 // pred_region
      %s596 = ssub.s32 128, 128
      %597 = vsyncadd [#allocation4], %s596
      %s599 = sshll.u32 [#allocation5], 4
      %s600 = int_to_ptr.vmem [resolvable:$true] %s599
      %602 = dma.vmem_to_hbm [thread:$0]  %s600, 128, %s12, [#allocation4]
    $region57: #{tpu_custom_call.1} parent=1 // pred_fallthru
      _
    // Predicated region
    $region58: #{tpu_custom_call.1} parent=1 // pred_check
      _
    $region59: #{tpu_custom_call.1} parent=1 // pred_check_branch
      %604 = sbr.rel (0) target = $region61
    $region60: #{tpu_custom_call.1} parent=1 // pred_region
      %s606 = ssub.s32 128, 128
      %607 = vsyncadd [#allocation7], %s606
      %s609 = sshll.u32 [#allocation6], 4
      %s610 = int_to_ptr.vmem [resolvable:$true] %s609
      %612 = dma.vmem_to_hbm [thread:$0]  %s610, 128, %s13, [#allocation7]
    $region61: #{tpu_custom_call.1} parent=1 // pred_fallthru
      _
    // Predicated region
    $region62: #{tpu_custom_call.1} parent=1 // pred_check
      _
    $region63: #{tpu_custom_call.1} parent=1 // pred_check_branch
      %614 = sbr.rel (0) target = $region65
    $region64: #{tpu_custom_call.1} parent=1 // pred_region
      %s616 = ssub.s32 128, 128
      %617 = vsyncadd [#allocation7], %s616
      %s619 = sshll.u32 [#allocation8], 4
      %s620 = int_to_ptr.vmem [resolvable:$true] %s619
      %622 = dma.vmem_to_hbm [thread:$0]  %s620, 128, %s14, [#allocation7]
    $region65: #{tpu_custom_call.1} parent=1 // pred_fallthru
      _
    // Predicated region
    $region66: #{tpu_custom_call.1} parent=1 // pred_check
      _
    $region67: #{tpu_custom_call.1} parent=1 // pred_check_branch
      %624 = sbr.rel (0) target = $region69
    $region68: #{tpu_custom_call.1} parent=1 // pred_region
      %s626 = ssub.s32 128, 128
      %627 = vsyncadd [#allocation10], %s626
      %s629 = sshll.u32 [#allocation9], 4
      %s630 = int_to_ptr.vmem [resolvable:$true] %s629
      %632 = dma.vmem_to_hbm [thread:$0]  %s630, 128, %s15, [#allocation10]
    $region69: #{tpu_custom_call.1} parent=1 // pred_fallthru
      _
    // Predicated region
    $region70: #{tpu_custom_call.1} parent=1 // pred_check
      _
    $region71: #{tpu_custom_call.1} parent=1 // pred_check_branch
      %634 = sbr.rel (0) target = $region73
    $region72: #{tpu_custom_call.1} parent=1 // pred_region
      %635 = dma.done [#allocation4], 128
    $region73: #{tpu_custom_call.1} parent=1 // pred_fallthru
      _
    // Predicated region
    $region74: #{tpu_custom_call.1} parent=1 // pred_check
      _
    $region75: #{tpu_custom_call.1} parent=1 // pred_check_branch
      %637 = sbr.rel (0) target = $region77
    $region76: #{tpu_custom_call.1} parent=1 // pred_region
      %638 = dma.done [#allocation7], 128
    $region77: #{tpu_custom_call.1} parent=1 // pred_fallthru
      _
    // Predicated region
    $region78: #{tpu_custom_call.1} parent=1 // pred_check
      _
    $region79: #{tpu_custom_call.1} parent=1 // pred_check_branch
      %640 = sbr.rel (0) target = $region81
    $region80: #{tpu_custom_call.1} parent=1 // pred_region
      %641 = dma.done [#allocation7], 128
    $region81: #{tpu_custom_call.1} parent=1 // pred_fallthru
      _
    // Predicated region
    $region82: #{tpu_custom_call.1} parent=1 // pred_check
      _
    $region83: #{tpu_custom_call.1} parent=1 // pred_check_branch
      %643 = sbr.rel (0) target = $region85
    $region84: #{tpu_custom_call.1} parent=1 // pred_region
      %644 = dma.done [#allocation10], 128
    $region85: #{tpu_custom_call.1} parent=1 // pred_fallthru
      _
    %645 = vsyncpa [#allocation3], 1
    %646 = vsyncpa [#allocation4], 1
    %647 = vsyncpa [#allocation7], 1
    %648 = vsyncpa [#allocation10], 1

</llo_original>
